<compile_context>
chip_gen: v7x
topology: tpu7x:2x2x1
jax: 0.10.0
libtpu: 0.0.40
codegen_flags: <defaults>
</compile_context>

<pallas_src>
import math

import jax
import jax.numpy as jnp
from jax.experimental import pallas as pl
from jax.experimental.pallas import tpu as pltpu

_NARROW = 8  # true input width at/below which a rest-layer uses the VPU path


# ----------------------------------------------------------------------------
# small helpers
# ----------------------------------------------------------------------------
def _rup(n, m):
    return ((n + m - 1) // m) * m


def _pad2(a, rows, cols):
    out = jnp.zeros((rows, cols), a.dtype)
    return out.at[: a.shape[0], : a.shape[1]].set(a)


# ----------------------------------------------------------------------------
# Pallas kernel (built per model topology)
# ----------------------------------------------------------------------------
def _build_kernel(eps, out_p, rest_meta):
    """Kernel args: x, wxcat, wnac_hi, wnac_lo, b1, (w_i, b_i)*n_rest, out."""
    n_rest = len(rest_meta)

    def kernel(x_ref, wxcat_ref, wnac_hi_ref, wnac_lo_ref, b1_ref, *rest):
        o_ref = rest[-1]
        m_refs = rest[:-1]  # 2 * n_rest refs, interleaved (w, b)
        assert len(m_refs) == 2 * n_rest

        x = x_ref[...]  # [TB, in_p] f32

        # Fused gate + first M layer: one lane-dense bf16 GEMM, f32 accumulation.
        xw = jnp.dot(
            x.astype(jnp.bfloat16),
            wxcat_ref[...],
            preferred_element_type=jnp.float32,
        )  # [TB, out_p + h1_p]

        # NOTE: sigmoid/exp/log hit the single EUP slot; on v6e/v7x a bf16 cast of
        # the sigmoid input would ~2x transcendental throughput if the EUP binds.
        g = jax.nn.sigmoid(xw[:, :out_p])                      # gate
        h = jnp.maximum(xw[:, out_p:] + b1_ref[...], 0.0)      # ReLU(x@M1^T + b1)

        # Remaining M layers.
        for li, meta in enumerate(rest_meta):
            w_ref = m_refs[2 * li]
            b_ref = m_refs[2 * li + 1]
            if meta["mode"] == "narrow":
                # True input width <= 8: VPU broadcast outer product, no MXU pass.
                wn = w_ref[...]                                # [8, dp] f32
                hn = b_ref[...]                                # [1, dp]
                for j in range(meta["prev_true"]):
                    hn = hn + h[:, j:j + 1] * wn[j:j + 1, :]
                h = hn
            else:
                h = jnp.dot(
                    h.astype(jnp.bfloat16),
                    w_ref[...],
                    preferred_element_type=jnp.float32,
                ) + b_ref[...]
            if meta["relu"]:
                h = jnp.maximum(h, 0.0)
        m = h  # [TB, out_p]

        # Multiplicative (NAC) path: compensated bf16x2 weight split,
        # two bf16 MXU passes with f32 accumulation.
        lx = jnp.log(x + eps).astype(jnp.bfloat16)
        acc = jnp.dot(lx, wnac_hi_ref[...], preferred_element_type=jnp.float32)
        acc = acc + jnp.dot(lx, wnac_lo_ref[...], preferred_element_type=jnp.float32)
        d = jnp.exp(acc)

        # out = g*d + (1-g)*m, rewritten; clamp to [0, 1].
        o_ref[...] = jnp.clip(m + g * (d - m), 0.0, 1.0).astype(o_ref.dtype)

    return kernel


# ----------------------------------------------------------------------------
# Forward wrapper
# ----------------------------------------------------------------------------
def ncla_forward(x, packed, eps=1e-10, tb=None, out_dtype=jnp.float32):
    """x: [B, in_dim] f32; packed: output of pack_params()."""
    B, in_dim = x.shape
    assert in_dim == packed["in_dim"]
    in_p, out_p = packed["in_p"], packed["out_p"]
    out_dim = packed["out_dim"]
    rest = packed["rest"]

    if tb is None:
        tb = min(512, _rup(B, 8))
        # v7x has 2 TensorCores: prefer >= 2 grid steps when the batch is big
        # enough so dimension_semantics=("parallel",) can use both.
        if B <= tb and B >= 128:
            tb = _rup((B + 1) // 2, 8)
    B_p = _rup(B, tb)

    # Pad x once to the aligned slab the kernel expects. Padded entries are 1.0
    # so log(x+eps) stays finite (padded weight rows are 0 -> contribute nothing).
    # Skipped entirely when the caller already supplies an aligned slab.
    if B == B_p and in_dim == in_p:
        x_p = x.astype(jnp.float32)
    else:
        x_p = jnp.ones((B_p, in_p), jnp.float32).at[:B, :in_dim].set(
            x.astype(jnp.float32)
        )

    kernel = _build_kernel(eps, out_p, packed["rest_meta"])

    # Weights: untiled VMEM operands -> copied once, single-buffered, resident.
    weight_spec = pl.BlockSpec(memory_space=pltpu.MemorySpace.VMEM)
    in_specs = [
        pl.BlockSpec((tb, in_p), lambda i: (i, 0)),   # x tile (streamed)
        weight_spec,                                  # fused G|M1 slab
        weight_spec,                                  # W_nac hi
        weight_spec,                                  # W_nac lo
        weight_spec,                                  # b1
    ]
    args = [x_p, packed["wxcat"], packed["wnac_hi"], packed["wnac_lo"], packed["b1"]]
    for (w, b) in rest:
        in_specs.extend([weight_spec, weight_spec])
        args.extend([w, b])

    # Scoped VMEM budget: resident weights + double-buffered x/out tiles + slack.
    out_isize = jnp.dtype(out_dtype).itemsize
    weight_bytes = sum(int(a.size) * a.dtype.itemsize for a in args[1:])
    io_bytes = 2 * tb * in_p * 4 + 2 * tb * out_p * out_isize
    vmem_limit = int(min(max(32 << 20, 1.25 * (weight_bytes + io_bytes) + (2 << 20)),
                         64 << 20))

    out_arr = pl.pallas_call(
        kernel,
        out_shape=jax.ShapeDtypeStruct((B_p, out_p), out_dtype),
        grid=(B_p // tb,),
        in_specs=in_specs,
        out_specs=pl.BlockSpec((tb, out_p), lambda i: (i, 0)),
        compiler_params=pltpu.CompilerParams(
            dimension_semantics=("parallel",),
            vmem_limit_bytes=vmem_limit,
        ),
    )(*args)

    return out_arr[:B, :out_dim]


# ----------------------------------------------------------------------------
# Parameter init (mirrors the PyTorch reset_weights / nn_initialization)
# ----------------------------------------------------------------------------
def _xavier_uniform(key, shape, gain=1.0):
    fan_out, fan_in = shape
    bound = gain * math.sqrt(6.0 / (fan_in + fan_out))
    return jax.random.uniform(key, shape, jnp.float32, -bound, bound)


def _kaiming_uniform_relu(key, shape):
    fan_out, fan_in = shape
    bound = math.sqrt(2.0) * math.sqrt(3.0 / fan_in)
    return jax.random.uniform(key, shape, jnp.float32, -bound, bound)


def init_params(key, in_dim, out_dim, hidden_dims=(1,)):
    hidden_dims = list(hidden_dims)
    n_m = len(hidden_dims) + 1
    keys = jax.random.split(key, 3 + n_m)

    W1 = _xavier_uniform(keys[0], (out_dim, in_dim), gain=5.0 / 3.0)  # tanh gain
    W2 = _xavier_uniform(keys[1], (out_dim, in_dim), gain=1.0)        # sigmoid gain
    W_nac = jnp.tanh(W1) * jax.nn.sigmoid(W2)                         # NAC weight

    G = _xavier_uniform(keys[2], (out_dim, in_dim), gain=1.0)         # gate weight

    dims = [in_dim] + hidden_dims
    M = []
    for i in range(len(dims) - 1):                                    # hidden + ReLU
        w = _kaiming_uniform_relu(keys[3 + i], (dims[i + 1], dims[i]))
        b = jnp.zeros((dims[i + 1],), jnp.float32)
        M.append((w, b))
    w = _xavier_uniform(keys[3 + len(dims) - 1], (out_dim, hidden_dims[-1]), 1.0)
    b = jnp.zeros((out_dim,), jnp.float32)
    M.append((w, b))

    return {"G": G, "W_nac": W_nac, "M": M}


def pack_params(params, in_dim, out_dim, hidden_dims=(1,)):
    """One-time transpose / pad / cast / split / concat of weights for the kernel."""
    hidden_dims = list(hidden_dims)
    in_p = _rup(in_dim, 128)
    out_p = _rup(out_dim, 128)
    h1_p = _rup(hidden_dims[0], 128)

    # Fused gate | first-M-layer slab (bf16, lane-dense). For out_p=128 the slab
    # is 256 lanes wide -> one full 256x256 MXU pass on v6e/v7x.
    G_t = _pad2(params["G"].T, in_p, out_p).astype(jnp.bfloat16)
    M = params["M"]
    w1, b1 = M[0]
    M1_t = _pad2(w1.T, in_p, h1_p).astype(jnp.bfloat16)
    wxcat = jnp.concatenate([G_t, M1_t], axis=1)                  # [in_p, out_p+h1_p]
    b1_p = _pad2(b1[None, :].astype(jnp.float32), 1, h1_p)

    # Compensated bf16x2 split of W_nac^T (hi + lo reconstructs f32 to ~bf16^2).
    wnac_f = _pad2(params["W_nac"].T.astype(jnp.float32), in_p, out_p)
    wnac_hi = wnac_f.astype(jnp.bfloat16)
    wnac_lo = (wnac_f - wnac_hi.astype(jnp.float32)).astype(jnp.bfloat16)

    # Remaining M layers.
    rest, rest_meta = [], []
    prev_true, prev_p = hidden_dims[0], h1_p
    out_true_dims = hidden_dims[1:] + [out_dim]
    n_rest = len(M) - 1
    for li, ((w, b), dt) in enumerate(zip(M[1:], out_true_dims)):
        dp = _rup(dt, 128)
        b_p = _pad2(b[None, :].astype(jnp.float32), 1, dp)
        if prev_true <= _NARROW:
            # VPU outer-product path: keep f32, pad rows only to the sublane (8).
            w_p = _pad2(w.T.astype(jnp.float32), _NARROW, dp)
            mode = "narrow"
        else:
            w_p = _pad2(w.T, prev_p, dp).astype(jnp.bfloat16)
            mode = "mxu"
        rest.append((w_p, b_p))
        rest_meta.append({"mode": mode, "prev_true": prev_true,
                          "relu": li < n_rest - 1})
        prev_true, prev_p = dt, dp

    return {
        "wxcat": wxcat,
        "b1": b1_p,
        "wnac_hi": wnac_hi,
        "wnac_lo": wnac_lo,
        "rest": rest,
        "rest_meta": rest_meta,
        "in_dim": in_dim,
        "out_dim": out_dim,
        "in_p": in_p,
        "out_p": out_p,
        "h1_p": h1_p,
    }


# ----------------------------------------------------------------------------
# Pure-JAX reference for correctness check
# ----------------------------------------------------------------------------
def ncla_reference(x, params, eps=1e-10):
    g = jax.nn.sigmoid(x @ params["G"].T)
    d = jnp.exp(jnp.log(x + eps) @ params["W_nac"].T)
    h = x
    M = params["M"]
    for i, (w, b) in enumerate(M):
        h = h @ w.T + b
        if i < len(M) - 1:
            h = jnp.maximum(h, 0.0)
    out = g * d + (1.0 - g) * h
    return jnp.clip(out, 0.0, 1.0)


if __name__ == "__main__":
    key = jax.random.PRNGKey(0)
    k_params, k_x = jax.random.split(key)

    B, in_dim, out_dim = 8, 32, 32
    hidden_dims = [1]          # module default
    eps = 1e-10

    params = init_params(k_params, in_dim, out_dim, hidden_dims)
    packed = pack_params(params, in_dim, out_dim, hidden_dims)

    # Inputs are cell-level densities/probabilities: strictly positive.
    x = jax.random.uniform(k_x, (B, in_dim), jnp.float32, 0.05, 1.0)

    out = ncla_forward(x, packed, eps=eps)
    out = jax.block_until_ready(out)

    ref = ncla_reference(x, params, eps=eps)
    assert out.shape == (B, out_dim)
    max_err = float(jnp.max(jnp.abs(out - ref)))
    assert max_err < 3e-2, f"mismatch vs reference: max abs err {max_err}"

    print("KERNEL_OK")
</pallas_src>

<mosaic_0001>
module attributes {stable_mosaic.version = 11 : i64} {
  func.func @kernel(%arg0: i32, %arg1: memref<8x128xf32, #tpu.memory_space<vmem>>, %arg2: memref<128x256xbf16, #tpu.memory_space<vmem>>, %arg3: memref<128x128xbf16, #tpu.memory_space<vmem>>, %arg4: memref<128x128xbf16, #tpu.memory_space<vmem>>, %arg5: memref<1x128xf32, #tpu.memory_space<vmem>>, %arg6: memref<8x128xf32, #tpu.memory_space<vmem>>, %arg7: memref<1x128xf32, #tpu.memory_space<vmem>>, %arg8: memref<8x128xf32, #tpu.memory_space<vmem>>) attributes {dimension_semantics = [#tpu.dimension_semantics<parallel>], iteration_bounds = array<i64: 1>, scalar_prefetch = 0 : i64, scratch_operands = 0 : i64, tpu.core_type = #tpu.core_type<tc>, window_params = [{transform_indices = @transform_0, window_bounds = array<i64: 8, 128>}, {pipeline_mode = #tpu.pipeline_mode<synchronous>, transform_indices = @transform_1, window_bounds = array<i64: 128, 256>}, {pipeline_mode = #tpu.pipeline_mode<synchronous>, transform_indices = @transform_2, window_bounds = array<i64: 128, 128>}, {pipeline_mode = #tpu.pipeline_mode<synchronous>, transform_indices = @transform_3, window_bounds = array<i64: 128, 128>}, {pipeline_mode = #tpu.pipeline_mode<synchronous>, transform_indices = @transform_4, window_bounds = array<i64: 1, 128>}, {pipeline_mode = #tpu.pipeline_mode<synchronous>, transform_indices = @transform_5, window_bounds = array<i64: 8, 128>}, {pipeline_mode = #tpu.pipeline_mode<synchronous>, transform_indices = @transform_6, window_bounds = array<i64: 1, 128>}, {transform_indices = @transform_7, window_bounds = array<i64: 8, 128>}]} {
    %c0 = arith.constant 0 : index
    %c0_0 = arith.constant 0 : index
    %0 = vector.load %arg1[%c0, %c0_0] : memref<8x128xf32, #tpu.memory_space<vmem>>, vector<8x128xf32>
    %1 = arith.truncf %0 : vector<8x128xf32> to vector<8x128xbf16>
    %c0_1 = arith.constant 0 : index
    %c0_2 = arith.constant 0 : index
    %2 = vector.load %arg2[%c0_1, %c0_2] : memref<128x256xbf16, #tpu.memory_space<vmem>>, vector<128x256xbf16>
    %cst = arith.constant dense<0.000000e+00> : vector<8x256xf32>
    %3 = tpu.matmul %1, %2, %cst {dimension_numbers = #tpu.dot_dimension_numbers<[1], [0], [0], [1], [0, 0, 1, 1], [], []>} : vector<8x128xbf16>, vector<128x256xbf16>, vector<8x256xf32> -> vector<8x256xf32>
    %4 = vector.extract_strided_slice %3 {offsets = [0, 0], sizes = [8, 128], strides = [1, 1]} : vector<8x256xf32> to vector<8x128xf32>
    %5 = arith.negf %4 : vector<8x128xf32>
    %6 = math.exp %5 : vector<8x128xf32>
    %cst_3 = arith.constant 1.000000e+00 : f32
    %7 = vector.broadcast %cst_3 : f32 to vector<8x128xf32>
    %8 = arith.addf %7, %6 : vector<8x128xf32>
    %9 = arith.divf %7, %8 : vector<8x128xf32>
    %10 = vector.extract_strided_slice %3 {offsets = [0, 128], sizes = [8, 128], strides = [1, 1]} : vector<8x256xf32> to vector<8x128xf32>
    %c0_4 = arith.constant 0 : index
    %c0_5 = arith.constant 0 : index
    %11 = vector.load %arg5[%c0_4, %c0_5] : memref<1x128xf32, #tpu.memory_space<vmem>>, vector<1x128xf32>
    %12 = vector.broadcast %11 : vector<1x128xf32> to vector<8x128xf32>
    %13 = arith.addf %10, %12 : vector<8x128xf32>
    %cst_6 = arith.constant 0.000000e+00 : f32
    %14 = vector.broadcast %cst_6 : f32 to vector<8x128xf32>
    %15 = arith.maximumf %13, %14 : vector<8x128xf32>
    %c0_7 = arith.constant 0 : index
    %c0_8 = arith.constant 0 : index
    %16 = vector.load %arg6[%c0_7, %c0_8] : memref<8x128xf32, #tpu.memory_space<vmem>>, vector<8x128xf32>
    %c0_9 = arith.constant 0 : index
    %c0_10 = arith.constant 0 : index
    %17 = vector.load %arg7[%c0_9, %c0_10] : memref<1x128xf32, #tpu.memory_space<vmem>>, vector<1x128xf32>
    %18 = vector.extract_strided_slice %15 {offsets = [0, 0], sizes = [8, 1], strides = [1, 1]} : vector<8x128xf32> to vector<8x1xf32>
    %19 = vector.extract_strided_slice %16 {offsets = [0, 0], sizes = [1, 128], strides = [1, 1]} : vector<8x128xf32> to vector<1x128xf32>
    %20 = vector.broadcast %18 : vector<8x1xf32> to vector<8x128xf32>
    %21 = vector.broadcast %19 : vector<1x128xf32> to vector<8x128xf32>
    %22 = arith.mulf %20, %21 : vector<8x128xf32>
    %23 = vector.broadcast %17 : vector<1x128xf32> to vector<8x128xf32>
    %24 = arith.addf %23, %22 : vector<8x128xf32>
    %cst_11 = arith.constant 1.000000e-10 : f32
    %25 = vector.broadcast %cst_11 : f32 to vector<8x128xf32>
    %26 = arith.addf %0, %25 : vector<8x128xf32>
    %27 = math.log %26 : vector<8x128xf32>
    %28 = arith.truncf %27 : vector<8x128xf32> to vector<8x128xbf16>
    %c0_12 = arith.constant 0 : index
    %c0_13 = arith.constant 0 : index
    %29 = vector.load %arg3[%c0_12, %c0_13] : memref<128x128xbf16, #tpu.memory_space<vmem>>, vector<128x128xbf16>
    %cst_14 = arith.constant dense<0.000000e+00> : vector<8x128xf32>
    %30 = tpu.matmul %28, %29, %cst_14 {dimension_numbers = #tpu.dot_dimension_numbers<[1], [0], [0], [1], [0, 0, 1, 1], [], []>} : vector<8x128xbf16>, vector<128x128xbf16>, vector<8x128xf32> -> vector<8x128xf32>
    %c0_15 = arith.constant 0 : index
    %c0_16 = arith.constant 0 : index
    %31 = vector.load %arg4[%c0_15, %c0_16] : memref<128x128xbf16, #tpu.memory_space<vmem>>, vector<128x128xbf16>
    %cst_17 = arith.constant dense<0.000000e+00> : vector<8x128xf32>
    %32 = tpu.matmul %28, %31, %cst_17 {dimension_numbers = #tpu.dot_dimension_numbers<[1], [0], [0], [1], [0, 0, 1, 1], [], []>} : vector<8x128xbf16>, vector<128x128xbf16>, vector<8x128xf32> -> vector<8x128xf32>
    %33 = arith.addf %30, %32 : vector<8x128xf32>
    %34 = math.exp %33 : vector<8x128xf32>
    %35 = arith.subf %34, %24 : vector<8x128xf32>
    %36 = arith.mulf %9, %35 : vector<8x128xf32>
    %37 = arith.addf %24, %36 : vector<8x128xf32>
    %cst_18 = arith.constant 0.000000e+00 : f32
    %cst_19 = arith.constant 1.000000e+00 : f32
    %38 = vector.broadcast %cst_18 : f32 to vector<8x128xf32>
    %39 = arith.maximumf %38, %37 : vector<8x128xf32>
    %40 = vector.broadcast %cst_19 : f32 to vector<8x128xf32>
    %41 = arith.minimumf %40, %39 : vector<8x128xf32>
    %c0_20 = arith.constant 0 : index
    %c0_21 = arith.constant 0 : index
    %42 = vector.load %arg8[%c0_20, %c0_21] : memref<8x128xf32, #tpu.memory_space<vmem>>, vector<8x128xf32>
    tpu.vector_store %arg8[%c0_20, %c0_21], %41 {strides = array<i32>} : memref<8x128xf32, #tpu.memory_space<vmem>>, vector<8x128xf32>,
    return
  }
  func.func @transform_0(%arg0: i32) -> (i32, i32) {
    %c0_i32 = arith.constant 0 : i32
    %c0_i32_0 = arith.constant 0 : i32
    return %arg0, %c0_i32 : i32, i32
  }
  func.func @transform_1(%arg0: i32) -> (i32, i32) {
    %c0_i32 = arith.constant 0 : i32
    %c0_i32_0 = arith.constant 0 : i32
    %c0_i32_1 = arith.constant 0 : i32
    return %c0_i32, %c0_i32_0 : i32, i32
  }
  func.func @transform_2(%arg0: i32) -> (i32, i32) {
    %c0_i32 = arith.constant 0 : i32
    %c0_i32_0 = arith.constant 0 : i32
    %c0_i32_1 = arith.constant 0 : i32
    return %c0_i32, %c0_i32_0 : i32, i32
  }
  func.func @transform_3(%arg0: i32) -> (i32, i32) {
    %c0_i32 = arith.constant 0 : i32
    %c0_i32_0 = arith.constant 0 : i32
    %c0_i32_1 = arith.constant 0 : i32
    return %c0_i32, %c0_i32_0 : i32, i32
  }
  func.func @transform_4(%arg0: i32) -> (i32, i32) {
    %c0_i32 = arith.constant 0 : i32
    %c0_i32_0 = arith.constant 0 : i32
    %c0_i32_1 = arith.constant 0 : i32
    return %c0_i32, %c0_i32_0 : i32, i32
  }
  func.func @transform_5(%arg0: i32) -> (i32, i32) {
    %c0_i32 = arith.constant 0 : i32
    %c0_i32_0 = arith.constant 0 : i32
    %c0_i32_1 = arith.constant 0 : i32
    return %c0_i32, %c0_i32_0 : i32, i32
  }
  func.func @transform_6(%arg0: i32) -> (i32, i32) {
    %c0_i32 = arith.constant 0 : i32
    %c0_i32_0 = arith.constant 0 : i32
    %c0_i32_1 = arith.constant 0 : i32
    return %c0_i32, %c0_i32_0 : i32, i32
  }
  func.func @transform_7(%arg0: i32) -> (i32, i32) {
    %c0_i32 = arith.constant 0 : i32
    %c0_i32_0 = arith.constant 0 : i32
    return %arg0, %c0_i32 : i32, i32
  }
}

</mosaic_0001>

<llo_original>
// kernel: tpu_custom_call.1
$region0: #{tpu_custom_call.1}
  #allocation0 [shape = 'u32[]', space=smem, size = 0x4, offset = 0x4, fixed_abs, tag = 'smem constant byte address 0x4 - core index']
  #allocation1 [shape = 'u32[144,128]{1,0:T(1,128)}', space=vmem, size = 0x12000, scoped, tag = 'internal scratch']
  %s0 = inlined_call_operand.hbm [shape: f32[8,128], index: 0, kind: input, shape index: {}]
  %s1 = inlined_call_operand.hbm [shape: bf16[128,256], index: 1, kind: input, shape index: {}]
  %s2 = inlined_call_operand.hbm [shape: bf16[128,128], index: 2, kind: input, shape index: {}]
  %s3 = inlined_call_operand.hbm [shape: bf16[128,128], index: 3, kind: input, shape index: {}]
  %s4 = inlined_call_operand.vmem [shape: f32[1,128], index: 4, kind: input, shape index: {}]
  %s5 = inlined_call_operand.vmem [shape: f32[8,128], index: 5, kind: input, shape index: {}]
  %s6 = inlined_call_operand.vmem [shape: f32[1,128], index: 6, kind: input, shape index: {}]
  %s7 = inlined_call_operand.hbm [shape: f32[8,128], index: 7, kind: output, shape index: {}]
  %s8 = sld [smem:[#allocation0]]
  $region54: #{tpu_custom_call.1} parent=0
    _
  %s10 = ssub.s32 1, %s8
  %s11 = scalar_select 0, %s10, %s8
  $region1: #{tpu_custom_call.1} parent=0
    #allocation2 [shape = 'u8[4096]{0}', space=vmem, size = 0x1000, scoped, tag = 'input window, operand 0, single buffered']
    #allocation3 [shape = 's32[1]{0}', space=sflag, size = 0x4, scoped, tag = 'scoped memory for tpu_custom_call.1']
    #allocation4 [shape = 's32[1]{0}', space=sflag, size = 0x4, scoped, tag = 'scoped memory for tpu_custom_call.1']
    #allocation5 [shape = 'u8[65536]{0}', space=vmem, size = 0x10000, scoped, tag = 'input window, operand 1, single buffered']
    #allocation6 [shape = 's32[1]{0}', space=sflag, size = 0x4, scoped, tag = 'scoped memory for tpu_custom_call.1']
    #allocation7 [shape = 'u8[32768]{0}', space=vmem, size = 0x8000, scoped, tag = 'input window, operand 2, single buffered']
    #allocation8 [shape = 'u8[32768]{0}', space=vmem, size = 0x8000, scoped, tag = 'input window, operand 3, single buffered']
    #allocation9 [shape = 's32[1]{0}', space=sflag, size = 0x4, scoped, tag = 'scoped memory for tpu_custom_call.1']
    #allocation10 [shape = 'u8[4096]{0}', space=vmem, size = 0x1000, scoped, tag = 'output window, operand 0, single buffered']
    %12 = vsyncpa [#allocation3], 0
    %13 = vsyncpa [#allocation6], 0
    %14 = vsyncpa [#allocation9], 0
    %15 = vsyncpa [#allocation4], 0
    // Predicated region
    $region2: #{tpu_custom_call.1} parent=1 // pred_check
      _
    $region3: #{tpu_custom_call.1} parent=1 // pred_check_branch
      %17 = sbr.rel (0) target = $region5
    $region4: #{tpu_custom_call.1} parent=1 // pred_region
      %s19 = ssub.s32 128, 128
      %20 = vsyncadd [#allocation3], %s19
      %s22 = sshll.u32 [#allocation2], 4
      %s23 = int_to_ptr.vmem [resolvable:$true] %s22
      %25 = dma.hbm_to_vmem [thread:$0]  %s0, 128, %s23, [#allocation3]
    $region5: #{tpu_custom_call.1} parent=1 // pred_fallthru
      _
    // Predicated region
    $region6: #{tpu_custom_call.1} parent=1 // pred_check
      _
    $region7: #{tpu_custom_call.1} parent=1 // pred_check_branch
      %27 = sbr.rel (0) target = $region9
    $region8: #{tpu_custom_call.1} parent=1 // pred_region
      %s29 = ssub.s32 2048, 2048
      %30 = vsyncadd [#allocation6], %s29
      %s31 = sshll.u32 [#allocation5], 4
      %s32 = int_to_ptr.vmem [resolvable:$true] %s31
      %37 = dma.hbm_to_vmem [thread:$0]  %s1, 2048, %s32, [#allocation6], 128, 128, 8
    $region9: #{tpu_custom_call.1} parent=1 // pred_fallthru
      _
    // Predicated region
    $region10: #{tpu_custom_call.1} parent=1 // pred_check
      _
    $region11: #{tpu_custom_call.1} parent=1 // pred_check_branch
      %39 = sbr.rel (0) target = $region13
    $region12: #{tpu_custom_call.1} parent=1 // pred_region
      %s41 = ssub.s32 1024, 1024
      %42 = vsyncadd [#allocation6], %s41
      %s43 = sshll.u32 [#allocation7], 4
      %s44 = int_to_ptr.vmem [resolvable:$true] %s43
      %49 = dma.hbm_to_vmem [thread:$0]  %s2, 1024, %s44, [#allocation6], 64, 64, 4
    $region13: #{tpu_custom_call.1} parent=1 // pred_fallthru
      _
    // Predicated region
    $region14: #{tpu_custom_call.1} parent=1 // pred_check
      _
    $region15: #{tpu_custom_call.1} parent=1 // pred_check_branch
      %51 = sbr.rel (0) target = $region17
    $region16: #{tpu_custom_call.1} parent=1 // pred_region
      %s53 = ssub.s32 1024, 1024
      %54 = vsyncadd [#allocation9], %s53
      %s55 = sshll.u32 [#allocation8], 4
      %s56 = int_to_ptr.vmem [resolvable:$true] %s55
      %61 = dma.hbm_to_vmem [thread:$0]  %s3, 1024, %s56, [#allocation9], 64, 64, 4
    $region17: #{tpu_custom_call.1} parent=1 // pred_fallthru
      _
    // Predicated region
    $region18: #{tpu_custom_call.1} parent=1 // pred_check
      _
    $region19: #{tpu_custom_call.1} parent=1 // pred_check_branch
      %63 = sbr.rel (0) target = $region21
    $region20: #{tpu_custom_call.1} parent=1 // pred_region
      _
    $region21: #{tpu_custom_call.1} parent=1 // pred_fallthru
      _
    // Predicated region
    $region22: #{tpu_custom_call.1} parent=1 // pred_check
      _
    $region23: #{tpu_custom_call.1} parent=1 // pred_check_branch
      %65 = sbr.rel (0) target = $region25
    $region24: #{tpu_custom_call.1} parent=1 // pred_region
      _
    $region25: #{tpu_custom_call.1} parent=1 // pred_fallthru
      _
    // Predicated region
    $region26: #{tpu_custom_call.1} parent=1 // pred_check
      _
    $region27: #{tpu_custom_call.1} parent=1 // pred_check_branch
      %67 = sbr.rel (0) target = $region29
    $region28: #{tpu_custom_call.1} parent=1 // pred_region
      _
    $region29: #{tpu_custom_call.1} parent=1 // pred_fallthru
      _
    // Predicated region
    $region30: #{tpu_custom_call.1} parent=1 // pred_check
      _
    $region31: #{tpu_custom_call.1} parent=1 // pred_check_branch
      %69 = sbr.rel (0) target = $region33
    $region32: #{tpu_custom_call.1} parent=1 // pred_region
      %70 = dma.done [#allocation3], 128
    $region33: #{tpu_custom_call.1} parent=1 // pred_fallthru
      _
    // Predicated region
    $region34: #{tpu_custom_call.1} parent=1 // pred_check
      _
    $region35: #{tpu_custom_call.1} parent=1 // pred_check_branch
      %72 = sbr.rel (0) target = $region37
    $region36: #{tpu_custom_call.1} parent=1 // pred_region
      %73 = dma.done [#allocation6], 2048
    $region37: #{tpu_custom_call.1} parent=1 // pred_fallthru
      _
    // Predicated region
    $region38: #{tpu_custom_call.1} parent=1 // pred_check
      _
    $region39: #{tpu_custom_call.1} parent=1 // pred_check_branch
      %75 = sbr.rel (0) target = $region41
    $region40: #{tpu_custom_call.1} parent=1 // pred_region
      %76 = dma.done [#allocation6], 1024
    $region41: #{tpu_custom_call.1} parent=1 // pred_fallthru
      _
    // Predicated region
    $region42: #{tpu_custom_call.1} parent=1 // pred_check
      _
    $region43: #{tpu_custom_call.1} parent=1 // pred_check_branch
      %78 = sbr.rel (0) target = $region45
    $region44: #{tpu_custom_call.1} parent=1 // pred_region
      %79 = dma.done [#allocation9], 1024
    $region45: #{tpu_custom_call.1} parent=1 // pred_fallthru
      _
    %v81 = vld [vmem:[#allocation2] sm:$0xff]
    %v82 = vpack.c.bf16 %v81, %v81
    %v83 = vld [vmem:[#allocation5] sm:$0xff]
    %v84 = vld [vmem:[#allocation5 + $0x8] sm:$0xff]
    %v85 = vld [vmem:[#allocation5 + $0x10] sm:$0xff]
    %v86 = vld [vmem:[#allocation5 + $0x18] sm:$0xff]
    %v87 = vld [vmem:[#allocation5 + $0x20] sm:$0xff]
    %v88 = vld [vmem:[#allocation5 + $0x28] sm:$0xff]
    %v89 = vld [vmem:[#allocation5 + $0x30] sm:$0xff]
    %v90 = vld [vmem:[#allocation5 + $0x38] sm:$0xff]
    %v91 = vld [vmem:[#allocation5 + $0x40] sm:$0xff]
    %v92 = vld [vmem:[#allocation5 + $0x48] sm:$0xff]
    %v93 = vld [vmem:[#allocation5 + $0x50] sm:$0xff]
    %v94 = vld [vmem:[#allocation5 + $0x58] sm:$0xff]
    %v95 = vld [vmem:[#allocation5 + $0x60] sm:$0xff]
    %v96 = vld [vmem:[#allocation5 + $0x68] sm:$0xff]
    %v97 = vld [vmem:[#allocation5 + $0x70] sm:$0xff]
    %v98 = vld [vmem:[#allocation5 + $0x78] sm:$0xff]
    %v115 = vunpack.c.l.b16 %v83
    %v116 = vunpack.c.h.b16 %v83
    %v117 = vunpack.c.l.b16 %v84
    %v118 = vunpack.c.h.b16 %v84
    %v119 = vunpack.c.l.b16 %v85
    %v120 = vunpack.c.h.b16 %v85
    %v121 = vunpack.c.l.b16 %v86
    %v122 = vunpack.c.h.b16 %v86
    %v123 = vunpack.c.l.b16 %v87
    %v124 = vunpack.c.h.b16 %v87
    %v125 = vunpack.c.l.b16 %v88
    %v126 = vunpack.c.h.b16 %v88
    %v127 = vunpack.c.l.b16 %v89
    %v128 = vunpack.c.h.b16 %v89
    %v129 = vunpack.c.l.b16 %v90
    %v130 = vunpack.c.h.b16 %v90
    %v131 = vunpack.c.l.b16 %v91
    %v132 = vunpack.c.h.b16 %v91
    %v133 = vunpack.c.l.b16 %v92
    %v134 = vunpack.c.h.b16 %v92
    %v135 = vunpack.c.l.b16 %v93
    %v136 = vunpack.c.h.b16 %v93
    %v137 = vunpack.c.l.b16 %v94
    %v138 = vunpack.c.h.b16 %v94
    %v139 = vunpack.c.l.b16 %v95
    %v140 = vunpack.c.h.b16 %v95
    %v141 = vunpack.c.l.b16 %v96
    %v142 = vunpack.c.h.b16 %v96
    %v143 = vunpack.c.l.b16 %v97
    %v144 = vunpack.c.h.b16 %v97
    %v145 = vunpack.c.l.b16 %v98
    %v146 = vunpack.c.h.b16 %v98
    %v147 = vpack.c.b16 %v117, %v115
    %v148 = vpack.c.b16 %v118, %v116
    %v149 = vpack.c.b16 %v121, %v119
    %v150 = vpack.c.b16 %v122, %v120
    %v151 = vpack.c.b16 %v125, %v123
    %v152 = vpack.c.b16 %v126, %v124
    %v153 = vpack.c.b16 %v129, %v127
    %v154 = vpack.c.b16 %v130, %v128
    %v155 = vpack.c.b16 %v133, %v131
    %v156 = vpack.c.b16 %v134, %v132
    %v157 = vpack.c.b16 %v137, %v135
    %v158 = vpack.c.b16 %v138, %v136
    %v159 = vpack.c.b16 %v141, %v139
    %v160 = vpack.c.b16 %v142, %v140
    %v161 = vpack.c.b16 %v145, %v143
    %v162 = vpack.c.b16 %v146, %v144
    %179 = vmatprep.subr.bf16.mxu0 %v148
    %180 = vmatpush1.bf16.msra.mxu0 %v147
    %181 = vmatprep.subr.bf16.mxu0 %v150
    %182 = vmatpush1.bf16.msra.mxu0 %v149
    %183 = vmatprep.subr.bf16.mxu0 %v152
    %184 = vmatpush1.bf16.msra.mxu0 %v151
    %185 = vmatprep.subr.bf16.mxu0 %v154
    %186 = vmatpush1.bf16.msra.mxu0 %v153
    %187 = vmatprep.subr.bf16.mxu0 %v156
    %188 = vmatpush1.bf16.msra.mxu0 %v155
    %189 = vmatprep.subr.bf16.mxu0 %v158
    %190 = vmatpush1.bf16.msra.mxu0 %v157
    %191 = vmatprep.subr.bf16.mxu0 %v160
    %192 = vmatpush1.bf16.msra.mxu0 %v159
    %193 = vmatprep.subr.bf16.mxu0 %v162
    %194 = vmatpush1.bf16.msra.mxu0 %v161
    %195 = vmatprep.subr.bf16.mxu0 0
    %196 = vmatpush1.bf16.msra.mxu0 0
    %197 = vmatprep.subr.bf16.mxu0 0
    %198 = vmatpush1.bf16.msra.mxu0 0
    %199 = vmatprep.subr.bf16.mxu0 0
    %200 = vmatpush1.bf16.msra.mxu0 0
    %201 = vmatprep.subr.bf16.mxu0 0
    %202 = vmatpush1.bf16.msra.mxu0 0
    %203 = vmatprep.subr.bf16.mxu0 0
    %204 = vmatpush1.bf16.msra.mxu0 0
    %205 = vmatprep.subr.bf16.mxu0 0
    %206 = vmatpush1.bf16.msra.mxu0 0
    %207 = vmatprep.subr.bf16.mxu0 0
    %208 = vmatpush1.bf16.msra.mxu0 0
    %209 = vmatprep.subr.bf16.mxu0 0
    %210 = vmatpush1.bf16.msra.mxu0 0
    %211 = vmatprep.mubr.bf16.mxu0 0
    %212 = vmatmul.mubr.bf16.gmra.mrb[0].mxu0 %v82
    %v213 = vpop.f32.mrb[0].mxu0
    %v214 = vadd.f32 0.0, %v213
    %v215 = vpop.f32.mrb[0].mxu0
    %v216 = vadd.f32 0.0, %v215
    %v217 = vpop.f32.mrb[0].mxu0
    %v218 = vpop.f32.mrb[0].mxu0
    %219 = vdwg.mxu0
    %v220 = vxor.u32 %v214, 2147483648
    %v221 = vmul.f32 %v220, 1.442695
    %v222 = vpow.pop %v221
    %v223 = vadd.f32 %v222, 1.0
    %v224 = vrcp.pop %v223
    %v225 = vmul.f32 1.0, %v224
    %v226 = vld [vmem:[%s4] sm:$0x1]
    %v228 = vlaneseq
    %v229 = vshrl.u32 %v228, 7
    %v230 = vsub.s32 0, %v229
    %v231 = vrot.slane %v226, %v230
    %v233 = vadd.f32 %v216, %v231
    %v234 = vmax.f32 %v233, 0.0
    %v235 = vld [vmem:[%s5] sm:$0xff]
    %v236 = vld [vmem:[%s6] sm:$0x1]
    %238 = vset.pattern.permute.xlu0 0
    %239 = vperm.xlu0 %238, %v234
    %v240 = vpop.permute.xlu0 %239
    %v242 = vlaneseq
    %v243 = vshrl.u32 %v242, 7
    %v244 = vsub.s32 0, %v243
    %v245 = vrot.slane %v235, %v244
    %v246 = vmul.f32 %v240, %v245
    %v248 = vlaneseq
    %v249 = vshrl.u32 %v248, 7
    %v250 = vsub.s32 0, %v249
    %v251 = vrot.slane %v236, %v250
    %v253 = vadd.f32 %v251, %v246
    %v254 = vadd.f32 %v81, 1e-10
    %v255 = vlog2.pop %v254
    %v256 = vmul.f32 %v255, 0.6931472
    %v257 = vpack.c.bf16 %v256, %v256
    %v258 = vld [vmem:[#allocation7] sm:$0xf]
    %v259 = vld [vmem:[#allocation7 + $0x4] sm:$0xf]
    %v260 = vld [vmem:[#allocation7 + $0x8] sm:$0xf]
    %v261 = vld [vmem:[#allocation7 + $0xc] sm:$0xf]
    %v262 = vld [vmem:[#allocation7 + $0x10] sm:$0xf]
    %v263 = vld [vmem:[#allocation7 + $0x14] sm:$0xf]
    %v264 = vld [vmem:[#allocation7 + $0x18] sm:$0xf]
    %v265 = vld [vmem:[#allocation7 + $0x1c] sm:$0xf]
    %v266 = vld [vmem:[#allocation7 + $0x20] sm:$0xf]
    %v267 = vld [vmem:[#allocation7 + $0x24] sm:$0xf]
    %v268 = vld [vmem:[#allocation7 + $0x28] sm:$0xf]
    %v269 = vld [vmem:[#allocation7 + $0x2c] sm:$0xf]
    %v270 = vld [vmem:[#allocation7 + $0x30] sm:$0xf]
    %v271 = vld [vmem:[#allocation7 + $0x34] sm:$0xf]
    %v272 = vld [vmem:[#allocation7 + $0x38] sm:$0xf]
    %v273 = vld [vmem:[#allocation7 + $0x3c] sm:$0xf]
    %v274 = vld [vmem:[#allocation8] sm:$0xf]
    %v275 = vld [vmem:[#allocation8 + $0x4] sm:$0xf]
    %v276 = vld [vmem:[#allocation8 + $0x8] sm:$0xf]
    %v277 = vld [vmem:[#allocation8 + $0xc] sm:$0xf]
    %v278 = vld [vmem:[#allocation8 + $0x10] sm:$0xf]
    %v279 = vld [vmem:[#allocation8 + $0x14] sm:$0xf]
    %v280 = vld [vmem:[#allocation8 + $0x18] sm:$0xf]
    %v281 = vld [vmem:[#allocation8 + $0x1c] sm:$0xf]
    %v282 = vld [vmem:[#allocation8 + $0x20] sm:$0xf]
    %v283 = vld [vmem:[#allocation8 + $0x24] sm:$0xf]
    %v284 = vld [vmem:[#allocation8 + $0x28] sm:$0xf]
    %v285 = vld [vmem:[#allocation8 + $0x2c] sm:$0xf]
    %v286 = vld [vmem:[#allocation8 + $0x30] sm:$0xf]
    %v287 = vld [vmem:[#allocation8 + $0x34] sm:$0xf]
    %v288 = vld [vmem:[#allocation8 + $0x38] sm:$0xf]
    %v289 = vld [vmem:[#allocation8 + $0x3c] sm:$0xf]
    %v306 = vunpack.c.l.b16 %v274
    %v307 = vunpack.c.l.b16 %v275
    %v308 = vunpack.c.l.b16 %v276
    %v309 = vunpack.c.l.b16 %v277
    %v310 = vunpack.c.l.b16 %v278
    %v311 = vunpack.c.l.b16 %v279
    %v312 = vunpack.c.l.b16 %v280
    %v313 = vunpack.c.l.b16 %v281
    %v314 = vunpack.c.l.b16 %v282
    %v315 = vunpack.c.l.b16 %v283
    %v316 = vunpack.c.l.b16 %v284
    %v317 = vunpack.c.l.b16 %v285
    %v318 = vunpack.c.l.b16 %v286
    %v319 = vunpack.c.l.b16 %v287
    %v320 = vunpack.c.l.b16 %v288
    %v321 = vunpack.c.l.b16 %v289
    %v322 = vpack.c.b16 %v307, %v306
    %v323 = vpack.c.b16 %v309, %v308
    %v324 = vpack.c.b16 %v311, %v310
    %v325 = vpack.c.b16 %v313, %v312
    %v326 = vpack.c.b16 %v315, %v314
    %v327 = vpack.c.b16 %v317, %v316
    %v328 = vpack.c.b16 %v319, %v318
    %v329 = vpack.c.b16 %v321, %v320
    %338 = vmatprep.subr.bf16.mxu0 0
    %339 = vmatpush1.bf16.msra.mxu0 %v322
    %340 = vmatprep.subr.bf16.mxu0 0
    %341 = vmatpush1.bf16.msra.mxu0 %v323
    %342 = vmatprep.subr.bf16.mxu0 0
    %343 = vmatpush1.bf16.msra.mxu0 %v324
    %344 = vmatprep.subr.bf16.mxu0 0
    %345 = vmatpush1.bf16.msra.mxu0 %v325
    %346 = vmatprep.subr.bf16.mxu0 0
    %347 = vmatpush1.bf16.msra.mxu0 %v326
    %348 = vmatprep.subr.bf16.mxu0 0
    %349 = vmatpush1.bf16.msra.mxu0 %v327
    %350 = vmatprep.subr.bf16.mxu0 0
    %351 = vmatpush1.bf16.msra.mxu0 %v328
    %352 = vmatprep.subr.bf16.mxu0 0
    %353 = vmatpush1.bf16.msra.mxu0 %v329
    %354 = vmatprep.subr.bf16.mxu0 0
    %355 = vmatpush1.bf16.msra.mxu0 0
    %356 = vmatprep.subr.bf16.mxu0 0
    %357 = vmatpush1.bf16.msra.mxu0 0
    %358 = vmatprep.subr.bf16.mxu0 0
    %359 = vmatpush1.bf16.msra.mxu0 0
    %360 = vmatprep.subr.bf16.mxu0 0
    %361 = vmatpush1.bf16.msra.mxu0 0
    %362 = vmatprep.subr.bf16.mxu0 0
    %363 = vmatpush1.bf16.msra.mxu0 0
    %364 = vmatprep.subr.bf16.mxu0 0
    %365 = vmatpush1.bf16.msra.mxu0 0
    %366 = vmatprep.subr.bf16.mxu0 0
    %367 = vmatpush1.bf16.msra.mxu0 0
    %368 = vmatprep.subr.bf16.mxu0 0
    %369 = vmatpush1.bf16.msra.mxu0 0
    %370 = vmatprep.mubr.bf16.mxu0 0
    %371 = vmatmul.mubr.bf16.gmra.mrb[0].mxu0 %v257
    %v372 = vpop.f32.mrb[0].mxu0
    %v373 = vadd.f32 0.0, %v372
    %v374 = vpop.f32.mrb[0].mxu0
    %v375 = vpop.f32.mrb[0].mxu0
    %v376 = vpop.f32.mrb[0].mxu0
    %377 = vdwg.mxu0
    %v394 = vunpack.c.l.b16 %v258
    %v395 = vunpack.c.l.b16 %v259
    %v396 = vunpack.c.l.b16 %v260
    %v397 = vunpack.c.l.b16 %v261
    %v398 = vunpack.c.l.b16 %v262
    %v399 = vunpack.c.l.b16 %v263
    %v400 = vunpack.c.l.b16 %v264
    %v401 = vunpack.c.l.b16 %v265
    %v402 = vunpack.c.l.b16 %v266
    %v403 = vunpack.c.l.b16 %v267
    %v404 = vunpack.c.l.b16 %v268
    %v405 = vunpack.c.l.b16 %v269
    %v406 = vunpack.c.l.b16 %v270
    %v407 = vunpack.c.l.b16 %v271
    %v408 = vunpack.c.l.b16 %v272
    %v409 = vunpack.c.l.b16 %v273
    %v410 = vpack.c.b16 %v395, %v394
    %v411 = vpack.c.b16 %v397, %v396
    %v412 = vpack.c.b16 %v399, %v398
    %v413 = vpack.c.b16 %v401, %v400
    %v414 = vpack.c.b16 %v403, %v402
    %v415 = vpack.c.b16 %v405, %v404
    %v416 = vpack.c.b16 %v407, %v406
    %v417 = vpack.c.b16 %v409, %v408
    %426 = vmatprep.subr.bf16.mxu0 0
    %427 = vmatpush1.bf16.msra.mxu0 %v410
    %428 = vmatprep.subr.bf16.mxu0 0
    %429 = vmatpush1.bf16.msra.mxu0 %v411
    %430 = vmatprep.subr.bf16.mxu0 0
    %431 = vmatpush1.bf16.msra.mxu0 %v412
    %432 = vmatprep.subr.bf16.mxu0 0
    %433 = vmatpush1.bf16.msra.mxu0 %v413
    %434 = vmatprep.subr.bf16.mxu0 0
    %435 = vmatpush1.bf16.msra.mxu0 %v414
    %436 = vmatprep.subr.bf16.mxu0 0
    %437 = vmatpush1.bf16.msra.mxu0 %v415
    %438 = vmatprep.subr.bf16.mxu0 0
    %439 = vmatpush1.bf16.msra.mxu0 %v416
    %440 = vmatprep.subr.bf16.mxu0 0
    %441 = vmatpush1.bf16.msra.mxu0 %v417
    %442 = vmatprep.subr.bf16.mxu0 0
    %443 = vmatpush1.bf16.msra.mxu0 0
    %444 = vmatprep.subr.bf16.mxu0 0
    %445 = vmatpush1.bf16.msra.mxu0 0
    %446 = vmatprep.subr.bf16.mxu0 0
    %447 = vmatpush1.bf16.msra.mxu0 0
    %448 = vmatprep.subr.bf16.mxu0 0
    %449 = vmatpush1.bf16.msra.mxu0 0
    %450 = vmatprep.subr.bf16.mxu0 0
    %451 = vmatpush1.bf16.msra.mxu0 0
    %452 = vmatprep.subr.bf16.mxu0 0
    %453 = vmatpush1.bf16.msra.mxu0 0
    %454 = vmatprep.subr.bf16.mxu0 0
    %455 = vmatpush1.bf16.msra.mxu0 0
    %456 = vmatprep.subr.bf16.mxu0 0
    %457 = vmatpush1.bf16.msra.mxu0 0
    %458 = vmatprep.mubr.bf16.mxu0 0
    %459 = vmatmul.mubr.bf16.gmra.mrb[0].mxu0 %v257
    %v460 = vpop.f32.mrb[0].mxu0
    %v461 = vadd.f32 %v373, %v460
    %v462 = vpop.f32.mrb[0].mxu0
    %v463 = vpop.f32.mrb[0].mxu0
    %v464 = vpop.f32.mrb[0].mxu0
    %465 = vdwg.mxu0
    %v466 = vmul.f32 %v461, 1.442695
    %v467 = vpow.pop %v466
    %v468 = vsub.f32 %v467, %v253
    %v469 = vmul.f32 %v225, %v468
    %v470 = vadd.f32 %v253, %v469
    %v471 = vmax.f32 %v470, 0.0
    %v472 = vmin.f32 %v471, 1.0
    %473 = vst [vmem:[#allocation10] sm:$0xff] %v472
    // Predicated region
    $region46: #{tpu_custom_call.1} parent=1 // pred_check
      _
    $region47: #{tpu_custom_call.1} parent=1 // pred_check_branch
      %475 = sbr.rel (0) target = $region49
    $region48: #{tpu_custom_call.1} parent=1 // pred_region
      %s477 = ssub.s32 128, 128
      %478 = vsyncadd [#allocation4], %s477
      %s480 = sshll.u32 [#allocation10], 4
      %s481 = int_to_ptr.vmem [resolvable:$true] %s480
      %483 = dma.vmem_to_hbm [thread:$0]  %s481, 128, %s7, [#allocation4]
    $region49: #{tpu_custom_call.1} parent=1 // pred_fallthru
      _
    // Predicated region
    $region50: #{tpu_custom_call.1} parent=1 // pred_check
      _
    $region51: #{tpu_custom_call.1} parent=1 // pred_check_branch
      %485 = sbr.rel (0) target = $region53
    $region52: #{tpu_custom_call.1} parent=1 // pred_region
      %486 = dma.done [#allocation4], 128
    $region53: #{tpu_custom_call.1} parent=1 // pred_fallthru
      _
    %487 = vsyncpa [#allocation3], 1
    %488 = vsyncpa [#allocation6], 1
    %489 = vsyncpa [#allocation9], 1
    %490 = vsyncpa [#allocation4], 1

</llo_original>
